<compile_context>
chip_gen: v7x
topology: tpu7x:2x2x1
jax: 0.10.0
libtpu: 0.0.40
codegen_flags: <defaults>
</compile_context>

<pallas_src>
import functools
import math

import jax
import jax.numpy as jnp
from jax import lax
from jax.experimental import pallas as pl
from jax.experimental.pallas import tpu as pltpu

_VMEM_LIMIT = 40 * 1024 * 1024
_VMEM_LIMIT_CONV = 48 * 1024 * 1024
_LANE = 128
_N_REDUCE_SHARDS = 2  # leading 'parallel' axis -> v7x megacore shares reductions


def _round_up(x, m):
    return (x + m - 1) // m * m


def _pick_row_chunk(h):
    """Row-chunk size for the fused conv (must divide h; leading dim, no 8-align needed)."""
    for cand in (16, 28, 8, 14, 7, 4, 2, 1):
        if h % cand == 0:
            return cand
    return 1


# ----------------------------------------------------------------------------
# Kernel 1a: FUSED 3x3 conv + bias + ReLU.  One grid step per image; the padded
# NHWC image lives in VMEM; the 3x3 gather happens in-kernel (no HBM im2col).
#   x_ref: (1, H+2, W+2, C)  bf16   w_ref: (3, 3*C, Cout) bf16 (rows = (kx, cin))
#   b_ref: (1, Cout) f32            o_ref: (1, H, W, Cout) bf16
# ----------------------------------------------------------------------------
def _conv3x3_fused_kernel(x_ref, w_ref, b_ref, o_ref, *, H, W, C, Cout, th):
    nch = H // th
    bias = b_ref[...]                                   # hoisted out of the loop

    def chunk(ci, carry):
        r0 = ci * th
        acc = jnp.zeros((th * W, Cout), jnp.float32)
        for dy in range(3):                              # ky: row shift (leading dim -> free)
            s0 = x_ref[0, pl.ds(r0 + dy, th), pl.ds(0, W), :]
            s1 = x_ref[0, pl.ds(r0 + dy, th), pl.ds(1, W), :]
            s2 = x_ref[0, pl.ds(r0 + dy, th), pl.ds(2, W), :]
            patch = jnp.concatenate([s0, s1, s2], axis=-1).reshape(th * W, 3 * C)
            acc = acc + jnp.dot(patch, w_ref[dy],
                                preferred_element_type=jnp.float32)
        acc = jnp.maximum(acc + bias, 0.0)
        o_ref[0, pl.ds(r0, th), :, :] = acc.reshape(th, W, Cout).astype(o_ref.dtype)
        return carry

    lax.fori_loop(0, nch, chunk, 0)


def _conv3x3_fused(x, w3, bias, th):
    n, h, w, c = x.shape
    cout = w3.shape[-1]
    xp = jnp.pad(x, ((0, 0), (1, 1), (1, 1), (0, 0)))    # bf16 padded image (1x copy)
    kern = functools.partial(_conv3x3_fused_kernel, H=h, W=w, C=c, Cout=cout, th=th)
    return pl.pallas_call(
        kern,
        out_shape=jax.ShapeDtypeStruct((n, h, w, cout), jnp.bfloat16),
        grid_spec=pltpu.PrefetchScalarGridSpec(
            num_scalar_prefetch=0,
            grid=(n,),
            in_specs=[
                pl.BlockSpec((1, h + 2, w + 2, c), lambda i: (i, 0, 0, 0)),
                pl.BlockSpec((3, 3 * c, cout), lambda i: (0, 0, 0)),
                pl.BlockSpec((1, cout), lambda i: (0, 0)),
            ],
            out_specs=pl.BlockSpec((1, h, w, cout), lambda i: (i, 0, 0, 0)),
        ),
        compiler_params=pltpu.CompilerParams(
            dimension_semantics=("parallel",),
            vmem_limit_bytes=_VMEM_LIMIT_CONV),
    )(xp, w3, bias)


# ----------------------------------------------------------------------------
# Kernel 1b: conv-as-matmul (im2col path, used only for conv1_1 where Cin=3).
# bf16 A (patch rows) x bf16 B (weights), f32 acc, fused bias + ReLU.
# ----------------------------------------------------------------------------
def _conv_mm_kernel(a_ref, b_ref, bias_ref, o_ref):
    acc = jnp.dot(a_ref[...], b_ref[...], preferred_element_type=jnp.float32)
    acc = acc + bias_ref[...]
    o_ref[...] = jnp.maximum(acc, 0.0).astype(o_ref.dtype)


def _conv_matmul(a, b, bias):
    m, k = a.shape
    k2, nout = b.shape
    assert k == k2
    if k <= 64:
        tm = 4096
    elif k <= 1152:
        tm = 2048
    elif k <= 2304:
        tm = 1024
    else:
        tm = 512
    mp = _round_up(m, tm)
    if mp != m:
        a = jnp.pad(a, ((0, mp - m), (0, 0)))
    out = pl.pallas_call(
        _conv_mm_kernel,
        out_shape=jax.ShapeDtypeStruct((mp, nout), jnp.bfloat16),
        grid_spec=pltpu.PrefetchScalarGridSpec(
            num_scalar_prefetch=0,
            grid=(mp // tm,),
            in_specs=[
                pl.BlockSpec((tm, k), lambda i: (i, 0)),
                pl.BlockSpec((k, nout), lambda i: (0, 0)),
                pl.BlockSpec((1, nout), lambda i: (0, 0)),
            ],
            out_specs=pl.BlockSpec((tm, nout), lambda i: (i, 0)),
        ),
        compiler_params=pltpu.CompilerParams(
            dimension_semantics=("parallel",),
            vmem_limit_bytes=_VMEM_LIMIT),
    )(a, b, bias)
    return out[:m]


def _conv3x3_relu_im2col(x, w2, bias):
    n, h, w, c = x.shape
    _, cout = w2.shape
    xp = jnp.pad(x, ((0, 0), (1, 1), (1, 1), (0, 0)))
    cols = [xp[:, dy:dy + h, dx:dx + w, :] for dy in range(3) for dx in range(3)]
    patches = jnp.concatenate(cols, axis=-1).reshape(n * h * w, 9 * c)
    out2d = _conv_matmul(patches.astype(jnp.bfloat16), w2, bias)
    return out2d.reshape(n, h, w, cout)


def conv3x3_relu(x, w3, bias):
    """3x3 conv, pad=1, stride=1, NHWC bf16 in/out, fused bias+ReLU.
    w3: (3, 3*Cin, Cout) bf16 with K ordered (ky, kx, cin)."""
    n, h, w, c = x.shape
    cout = w3.shape[-1]
    if c >= 16:
        th = _pick_row_chunk(h)
        return _conv3x3_fused(x.astype(jnp.bfloat16), w3, bias, th)
    return _conv3x3_relu_im2col(x, w3.reshape(9 * c, cout), bias)


# ----------------------------------------------------------------------------
# Kernel 2: gram matrix, G = M^T M, single step, transposed-LHS dot on the MXU.
# M is (H*W, B*C) straight from NHWC -> no feats.T materialized in HBM.
# ----------------------------------------------------------------------------
def _gram_kernel(m_ref, o_ref, *, inv_norm):
    mf = m_ref[...]
    g = jax.lax.dot_general(mf, mf, (((0,), (0,)), ((), ())),
                            preferred_element_type=jnp.float32)
    o_ref[...] = g * inv_norm


def gram_matrix(x):
    """x: (B,H,W,C) -> torch-style gram of shape (B*C, B*C), f32."""
    b, h, w, c = x.shape
    m = jnp.transpose(x, (1, 2, 0, 3)).reshape(h * w, b * c)
    rows = _round_up(h * w, 8)
    if rows != h * w:
        m = jnp.pad(m, ((0, rows - h * w), (0, 0)))
    m = m.astype(jnp.bfloat16)
    bc = b * c
    return pl.pallas_call(
        functools.partial(_gram_kernel, inv_norm=1.0 / float(b * c * h * w)),
        out_shape=jax.ShapeDtypeStruct((bc, bc), jnp.float32),
        grid_spec=pltpu.PrefetchScalarGridSpec(
            num_scalar_prefetch=0,
            grid=(1,),
            in_specs=[pl.BlockSpec((rows, bc), lambda i: (0, 0))],
            out_specs=pl.BlockSpec((bc, bc), lambda i: (0, 0)),
        ),
        compiler_params=pltpu.CompilerParams(
            dimension_semantics=("arbitrary",),
            vmem_limit_bytes=_VMEM_LIMIT),
    )(m)


# ----------------------------------------------------------------------------
# Kernel 3: fused feature MSE.  One pass over (x, y, guidance) producing BOTH
#   sum((x-y)^2)  and  sum((g*(x-y))^2)   (two lane accumulators).
# ----------------------------------------------------------------------------
def _feat_mse_kernel(x_ref, y_ref, g_ref, o_plain_ref, o_w_ref):
    @pl.when(pl.program_id(1) == 0)
    def _():
        o_plain_ref[...] = jnp.zeros_like(o_plain_ref)
        o_w_ref[...] = jnp.zeros_like(o_w_ref)

    d = x_ref[...].astype(jnp.float32) - y_ref[...].astype(jnp.float32)
    d2 = d * d
    g2 = g_ref[...] * g_ref[...]
    o_plain_ref[...] += jnp.sum(d2, axis=0, keepdims=True)
    o_w_ref[...] += jnp.sum(d2 * g2, axis=0, keepdims=True)


def feature_mse(xb, yb, g):
    """Returns (mean((x-y)^2), mean((g*(x-y))^2)) in a single fused pass."""
    b, h, w, c = xb.shape
    rows = b * h * w
    x2 = xb.reshape(rows, c)
    y2 = yb.reshape(rows, c)
    g2 = g.reshape(rows, 1).astype(jnp.float32)
    tm = max(512, min(8192, (1 << 20) // (2 * c)))          # ~1 MiB bf16 block
    rp = _round_up(rows, tm * _N_REDUCE_SHARDS)
    if rp != rows:
        x2 = jnp.pad(x2, ((0, rp - rows), (0, 0)))
        y2 = jnp.pad(y2, ((0, rp - rows), (0, 0)))
        g2 = jnp.pad(g2, ((0, rp - rows), (0, 0)))
    per_shard = rp // tm // _N_REDUCE_SHARDS
    sums = pl.pallas_call(
        _feat_mse_kernel,
        out_shape=(jax.ShapeDtypeStruct((_N_REDUCE_SHARDS, c), jnp.float32),
                   jax.ShapeDtypeStruct((_N_REDUCE_SHARDS, c), jnp.float32)),
        grid_spec=pltpu.PrefetchScalarGridSpec(
            num_scalar_prefetch=0,
            grid=(_N_REDUCE_SHARDS, per_shard),
            in_specs=[
                pl.BlockSpec((tm, c), lambda p, i: (p * per_shard + i, 0)),
                pl.BlockSpec((tm, c), lambda p, i: (p * per_shard + i, 0)),
                pl.BlockSpec((tm, 1), lambda p, i: (p * per_shard + i, 0)),
            ],
            out_specs=(pl.BlockSpec((1, c), lambda p, i: (p, 0)),
                       pl.BlockSpec((1, c), lambda p, i: (p, 0))),
        ),
        compiler_params=pltpu.CompilerParams(
            dimension_semantics=("parallel", "arbitrary"),
            vmem_limit_bytes=_VMEM_LIMIT),
    )(x2, y2, g2)
    denom = float(rows * c)
    return jnp.sum(sums[0]) / denom, jnp.sum(sums[1]) / denom


# ----------------------------------------------------------------------------
# Kernel 4: SmoothL1 (beta=1, mean) pairwise reduction.
# ----------------------------------------------------------------------------
def _smoothl1_kernel(x_ref, y_ref, o_ref):
    @pl.when(pl.program_id(0) == 0)
    def _():
        o_ref[...] = jnp.zeros_like(o_ref)
    d = x_ref[...] - y_ref[...]
    ad = jnp.abs(d)
    v = jnp.where(ad < 1.0, 0.5 * d * d, ad - 0.5)
    o_ref[...] += jnp.sum(v, axis=0, keepdims=True)


def smooth_l1_mean(x, y):
    xf = x.reshape(-1).astype(jnp.float32)
    yf = y.reshape(-1).astype(jnp.float32)
    n = xf.shape[0]
    rows = _round_up(pl.cdiv(n, _LANE), 8)
    rows_block = min(rows, 2048)
    rows_p = _round_up(rows, rows_block)
    pad = rows_p * _LANE - n
    xf = jnp.pad(xf, (0, pad)).reshape(rows_p, _LANE)
    yf = jnp.pad(yf, (0, pad)).reshape(rows_p, _LANE)
    lane_sums = pl.pallas_call(
        _smoothl1_kernel,
        out_shape=jax.ShapeDtypeStruct((1, _LANE), jnp.float32),
        grid_spec=pltpu.PrefetchScalarGridSpec(
            num_scalar_prefetch=0,
            grid=(rows_p // rows_block,),
            in_specs=[pl.BlockSpec((rows_block, _LANE), lambda i: (i, 0)),
                      pl.BlockSpec((rows_block, _LANE), lambda i: (i, 0))],
            out_specs=pl.BlockSpec((1, _LANE), lambda i: (0, 0)),
        ),
        compiler_params=pltpu.CompilerParams(
            dimension_semantics=("arbitrary",),
            vmem_limit_bytes=_VMEM_LIMIT),
    )(xf, yf)
    return jnp.sum(lane_sums) / n


# ----------------------------------------------------------------------------
# Plain-JAX glue: bilinear resize (NCHW), 2x2 pools (NHWC), align loss.
# ----------------------------------------------------------------------------
def bilinear_resize(x, oh, ow, align_corners):
    n, c, h, w = x.shape
    oy = jnp.arange(oh, dtype=jnp.float32)
    ox = jnp.arange(ow, dtype=jnp.float32)
    if align_corners:
        ys = oy * ((h - 1) / (oh - 1)) if oh > 1 else jnp.zeros((oh,), jnp.float32)
        xs = ox * ((w - 1) / (ow - 1)) if ow > 1 else jnp.zeros((ow,), jnp.float32)
    else:
        ys = jnp.maximum((oy + 0.5) * (h / oh) - 0.5, 0.0)
        xs = jnp.maximum((ox + 0.5) * (w / ow) - 0.5, 0.0)
    y0 = jnp.clip(jnp.floor(ys).astype(jnp.int32), 0, h - 1)
    x0 = jnp.clip(jnp.floor(xs).astype(jnp.int32), 0, w - 1)
    y1 = jnp.minimum(y0 + 1, h - 1)
    x1 = jnp.minimum(x0 + 1, w - 1)
    wy = (ys - y0.astype(jnp.float32))[None, None, :, None]
    wx = (xs - x0.astype(jnp.float32))[None, None, None, :]
    top = x[:, :, y0, :]
    bot = x[:, :, y1, :]
    tl, tr = top[:, :, :, x0], top[:, :, :, x1]
    bl, br = bot[:, :, :, x0], bot[:, :, :, x1]
    t = tl * (1.0 - wx) + tr * wx
    b = bl * (1.0 - wx) + br * wx
    return t * (1.0 - wy) + b * wy


def maxpool2x2(x):  # NHWC
    n, h, w, c = x.shape
    return jnp.max(x.reshape(n, h // 2, 2, w // 2, 2, c), axis=(2, 4))


def avgpool2x2(x):  # NHWC
    n, h, w, c = x.shape
    return jnp.mean(x.reshape(n, h // 2, 2, w // 2, 2, c), axis=(2, 4))


def calc_align_loss(gen, tar):
    # gen, tar: (B, 28, 28, C) NHWC.  Tiny -> plain JAX.
    gen = gen.astype(jnp.float32)
    tar = tar.astype(jnp.float32)
    coord = -1.0 + jnp.arange(28, dtype=jnp.float32) / 14.0  # torch.arange(-1,1,1/14)
    coord_y = coord[None, :, None, None]
    coord_x = coord[None, None, :, None]

    def sum_u_v(v):
        return jnp.sum(v, axis=(1, 2)) + 1e-07               # (B, C)

    sum_gen = sum_u_v(gen)
    sum_tar = sum_u_v(tar)
    c_u_k = sum_u_v(coord_x * tar) / sum_tar
    c_v_k = sum_u_v(coord_y * tar) / sum_tar
    c_u_k_p = sum_u_v(coord_x * gen) / sum_gen
    c_v_k_p = sum_u_v(coord_y * gen) / sum_gen
    a = jnp.stack([c_u_k, c_v_k], -1)
    b = jnp.stack([c_u_k_p, c_v_k_p], -1)
    return jnp.mean((a - b) ** 2)


# ----------------------------------------------------------------------------
# VGG16 perceptual loss (features[:23], He-init weights, frozen/eval).
# ----------------------------------------------------------------------------
_VGG_CONVS = [(64, 3), (64, 64),                   # block 0
              (128, 64), (128, 128),               # block 1
              (256, 128), (256, 256), (256, 256),  # block 2
              (512, 256), (512, 512), (512, 512)]  # block 3

_BLOCK_DEFS = [
    [("conv", 0), ("conv", 1)],
    [("pool",), ("conv", 2), ("conv", 3)],
    [("pool",), ("conv", 4), ("conv", 5), ("conv", 6)],
    [("pool",), ("conv", 7), ("conv", 8), ("conv", 9)],
]


def init_vgg_params(key):
    """He-init conv weights, reshaped to (3, 3*Cin, Cout) bf16 (K order ky,kx,cin)."""
    layers = []
    for cout, cin in _VGG_CONVS:
        key, k = jax.random.split(key)
        std = math.sqrt(2.0 / (cin * 9))
        w = jax.random.normal(k, (cout, cin, 3, 3), jnp.float32) * std
        b = jnp.zeros((cout,), jnp.float32)
        wm = jnp.transpose(w, (2, 3, 1, 0)).reshape(3, 3 * cin, cout).astype(jnp.bfloat16)
        layers.append((wm, b.reshape(1, cout)))
    return tuple(layers)


@jax.jit
def _vgg_core(x, y, params):
    """x, y: (B, 224, 224, 3) float32, NHWC."""
    B = x.shape[0]

    err = jnp.mean((x - y) ** 2, axis=-1, keepdims=True)     # (B,224,224,1)
    gmin, gmax = jnp.min(err), jnp.max(err)
    guidance = (err - gmin) / (gmax - gmin + 1e-12)

    z = jnp.concatenate([x, y], axis=0).astype(jnp.bfloat16)  # run VGG on both
    loss = jnp.float32(0.0)
    for i, block in enumerate(_BLOCK_DEFS):
        if i != 0:
            guidance = avgpool2x2(guidance)
        h_, w_ = z.shape[1], z.shape[2]
        weight = 1000.0 / (w_ * h_)
        for op in block:
            if op[0] == "pool":
                z = maxpool2x2(z)
            else:
                wm, bias = params[op[1]]
                z = conv3x3_relu(z, wm, bias)
        xb, yb = z[:B], z[B:]
        plain_mse, weighted_mse = feature_mse(xb, yb, guidance)
        if i == 1 or i == 2:
            loss = loss + weight * weighted_mse
        if i == 3:
            loss = loss + calc_align_loss(xb, yb)
        if i in (1, 2, 3):
            gx = gram_matrix(xb)
            gy = gram_matrix(yb)
            loss = loss + jnp.mean((gx - gy) ** 2)   # tiny (<=512x512): plain JAX
        loss = loss + plain_mse
    return loss


def vgg_perceptual_loss(inp, tgt, params, resize=True):
    if inp.shape[1] != 3:
        inp = jnp.tile(inp, (1, 3, 1, 1))
        tgt = jnp.tile(tgt, (1, 3, 1, 1))
    if resize:
        inp = bilinear_resize(inp, 224, 224, align_corners=False)
        tgt = bilinear_resize(tgt, 224, 224, align_corners=False)
    inp = jnp.transpose(inp, (0, 2, 3, 1)).astype(jnp.float32)   # NHWC once
    tgt = jnp.transpose(tgt, (0, 2, 3, 1)).astype(jnp.float32)
    return _vgg_core(inp, tgt, params)


# ----------------------------------------------------------------------------
# UnSupervised_SL1Loss.forward
# ----------------------------------------------------------------------------
def unsupervised_sl1_loss(results, imgs, targets, masks, params,
                          levels=3, alpha=1.0, beta=1.0, use_consistentLoss=False):
    ref_img = imgs[:, 0]
    source_imgs = imgs[:, 1:]
    image_loss = jnp.float32(0.0)
    for l in reversed(range(levels)):
        oh = int(math.floor(ref_img.shape[2] * (1.0 / 2 ** l)))
        ow = int(math.floor(ref_img.shape[3] * (1.0 / 2 ** l)))
        ref_resized = bilinear_resize(ref_img, oh, ow, align_corners=True)
        pred_view = results[f"warp_view_{l}"]
        image_loss = image_loss + alpha * smooth_l1_mean(ref_resized, pred_view) * 2 ** (1 - l)
        image_loss = image_loss + beta * vgg_perceptual_loss(ref_resized, pred_view, params) * 2 ** (1 - l)
        if use_consistentLoss:
            for k in range(source_imgs.shape[1]):
                src_k = source_imgs[:, k]
                src_k_resized = bilinear_resize(src_k, oh, ow, align_corners=True)
                recon = results[f"reconstructed_input_{l}"][k]
                image_loss = image_loss + alpha * smooth_l1_mean(src_k_resized, recon) * 2 ** (1 - l)
    return image_loss


# ----------------------------------------------------------------------------
if __name__ == "__main__":
    key = jax.random.PRNGKey(0)
    key, k_img, k_w = jax.random.split(key, 3)

    B, V, C, H, W = 1, 2, 3, 16, 16
    imgs = jax.random.uniform(k_img, (B, V, C, H, W), jnp.float32)

    results = {}
    for l in range(3):
        key, kl = jax.random.split(key)
        results[f"warp_view_{l}"] = jax.random.uniform(
            kl, (B, 3, H // 2 ** l, W // 2 ** l), jnp.float32)

    targets = None  # unused by the reference forward
    masks = None    # unused by the reference forward

    params = init_vgg_params(k_w)

    loss = unsupervised_sl1_loss(results, imgs, targets, masks, params,
                                 levels=3, use_consistentLoss=False)
    loss = jax.block_until_ready(loss)
    assert jnp.isfinite(loss)
    print("KERNEL_OK")
</pallas_src>

<mosaic_0001>
module attributes {stable_mosaic.version = 11 : i64} {
  func.func @_smoothl1_kernel(%arg0: i32, %arg1: memref<8x128xf32, #tpu.memory_space<vmem>>, %arg2: memref<8x128xf32, #tpu.memory_space<vmem>>, %arg3: memref<1x128xf32, #tpu.memory_space<vmem>>) attributes {dimension_semantics = [#tpu.dimension_semantics<arbitrary>], iteration_bounds = array<i64: 1>, scalar_prefetch = 0 : i64, scratch_operands = 0 : i64, tpu.core_type = #tpu.core_type<tc>, window_params = [{transform_indices = @transform_0, window_bounds = array<i64: 8, 128>}, {transform_indices = @transform_1, window_bounds = array<i64: 8, 128>}, {pipeline_mode = #tpu.pipeline_mode<synchronous>, transform_indices = @transform_2, window_bounds = array<i64: 1, 128>}]} {
    %c0_i32 = arith.constant 0 : i32
    %0 = arith.cmpi eq, %arg0, %c0_i32 : i32
    %1 = arith.extui %0 : i1 to i32
    %c0_i32_0 = arith.constant 0 : i32
    %2 = arith.cmpi ne, %1, %c0_i32_0 : i32
    scf.if %2 {
      %cst_11 = arith.constant 0.000000e+00 : f32
      %20 = vector.broadcast %cst_11 : f32 to vector<1x128xf32>
      %c0_12 = arith.constant 0 : index
      %c0_13 = arith.constant 0 : index
      %21 = vector.load %arg3[%c0_12, %c0_13] : memref<1x128xf32, #tpu.memory_space<vmem>>, vector<1x128xf32>
      tpu.vector_store %arg3[%c0_12, %c0_13], %20 {strides = array<i32>} : memref<1x128xf32, #tpu.memory_space<vmem>>, vector<1x128xf32>,
    } else {
    }
    %c0 = arith.constant 0 : index
    %c0_1 = arith.constant 0 : index
    %3 = vector.load %arg1[%c0, %c0_1] : memref<8x128xf32, #tpu.memory_space<vmem>>, vector<8x128xf32>
    %c0_2 = arith.constant 0 : index
    %c0_3 = arith.constant 0 : index
    %4 = vector.load %arg2[%c0_2, %c0_3] : memref<8x128xf32, #tpu.memory_space<vmem>>, vector<8x128xf32>
    %5 = arith.subf %3, %4 : vector<8x128xf32>
    %6 = math.absf %5 : vector<8x128xf32>
    %cst = arith.constant 1.000000e+00 : f32
    %7 = vector.broadcast %cst : f32 to vector<8x128xf32>
    %8 = arith.cmpf olt, %6, %7 : vector<8x128xf32>
    %cst_4 = arith.constant 5.000000e-01 : f32
    %9 = vector.broadcast %cst_4 : f32 to vector<8x128xf32>
    %10 = arith.mulf %9, %5 : vector<8x128xf32>
    %11 = arith.mulf %10, %5 : vector<8x128xf32>
    %cst_5 = arith.constant 5.000000e-01 : f32
    %12 = vector.broadcast %cst_5 : f32 to vector<8x128xf32>
    %13 = arith.subf %6, %12 : vector<8x128xf32>
    %14 = arith.select %8, %11, %13 : vector<8x128xi1>, vector<8x128xf32>
    %c0_6 = arith.constant 0 : index
    %c0_7 = arith.constant 0 : index
    %15 = vector.load %arg3[%c0_6, %c0_7] : memref<1x128xf32, #tpu.memory_space<vmem>>, vector<1x128xf32>
    %cst_8 = arith.constant dense<0.000000e+00> : vector<128xf32>
    %16 = vector.multi_reduction <add>, %14, %cst_8 [0] : vector<8x128xf32> to vector<128xf32>
    %17 = vector.shape_cast %16 : vector<128xf32> to vector<1x128xf32>
    %18 = arith.addf %15, %17 : vector<1x128xf32>
    %c0_9 = arith.constant 0 : index
    %c0_10 = arith.constant 0 : index
    %19 = vector.load %arg3[%c0_9, %c0_10] : memref<1x128xf32, #tpu.memory_space<vmem>>, vector<1x128xf32>
    tpu.vector_store %arg3[%c0_9, %c0_10], %18 {strides = array<i32>} : memref<1x128xf32, #tpu.memory_space<vmem>>, vector<1x128xf32>,
    return
  }
  func.func @transform_0(%arg0: i32) -> (i32, i32) {
    %c0_i32 = arith.constant 0 : i32
    %c0_i32_0 = arith.constant 0 : i32
    return %arg0, %c0_i32 : i32, i32
  }
  func.func @transform_1(%arg0: i32) -> (i32, i32) {
    %c0_i32 = arith.constant 0 : i32
    %c0_i32_0 = arith.constant 0 : i32
    return %arg0, %c0_i32 : i32, i32
  }
  func.func @transform_2(%arg0: i32) -> (i32, i32) {
    %c0_i32 = arith.constant 0 : i32
    %c0_i32_0 = arith.constant 0 : i32
    %c0_i32_1 = arith.constant 0 : i32
    return %c0_i32, %c0_i32_0 : i32, i32
  }
}

</mosaic_0001>

<llo_original>
// kernel: tpu_custom_call.1
$region0: #{tpu_custom_call.1}
  #allocation0 [shape = 'u32[]', space=smem, size = 0x4, offset = 0x4, fixed_abs, tag = 'smem constant byte address 0x4 - core index']
  #allocation1 [shape = 'u32[144,128]{1,0:T(1,128)}', space=vmem, size = 0x12000, scoped, tag = 'internal scratch']
  %s0 = inlined_call_operand.hbm [shape: f32[8,128], index: 0, kind: input, shape index: {}]
  %s1 = inlined_call_operand.hbm [shape: f32[8,128], index: 1, kind: input, shape index: {}]
  %s2 = inlined_call_operand.hbm [shape: f32[1,128], index: 2, kind: output, shape index: {}]
  %s3 = sld [smem:[#allocation0]]
  $region30: #{tpu_custom_call.1} parent=0
    _
  %s5 = ssub.s32 1, %s3
  %s6 = scalar_select 0, %s5, %s3
  $region1: #{tpu_custom_call.1} parent=0
    #allocation2 [shape = 'u8[4096]{0}', space=vmem, size = 0x1000, scoped, tag = 'input window, operand 0, single buffered']
    #allocation3 [shape = 's32[1]{0}', space=sflag, size = 0x4, scoped, tag = 'scoped memory for tpu_custom_call.1']
    #allocation4 [shape = 's32[1]{0}', space=sflag, size = 0x4, scoped, tag = 'scoped memory for tpu_custom_call.1']
    #allocation5 [shape = 'u8[4096]{0}', space=vmem, size = 0x1000, scoped, tag = 'input window, operand 1, single buffered']
    #allocation6 [shape = 's32[1]{0}', space=sflag, size = 0x4, scoped, tag = 'scoped memory for tpu_custom_call.1']
    #allocation7 [shape = 'u8[512]{0}', space=vmem, size = 0x400, scoped, tag = 'output window, operand 0, single buffered']
    %7 = vsyncpa [#allocation3], 0
    %8 = vsyncpa [#allocation6], 0
    %9 = vsyncpa [#allocation4], 0
    // Predicated region
    $region2: #{tpu_custom_call.1} parent=1 // pred_check
      _
    $region3: #{tpu_custom_call.1} parent=1 // pred_check_branch
      %11 = sbr.rel (0) target = $region5
    $region4: #{tpu_custom_call.1} parent=1 // pred_region
      %s13 = ssub.s32 128, 128
      %14 = vsyncadd [#allocation3], %s13
      %s16 = sshll.u32 [#allocation2], 4
      %s17 = int_to_ptr.vmem [resolvable:$true] %s16
      %19 = dma.hbm_to_vmem [thread:$0]  %s0, 128, %s17, [#allocation3]
    $region5: #{tpu_custom_call.1} parent=1 // pred_fallthru
      _
    // Predicated region
    $region6: #{tpu_custom_call.1} parent=1 // pred_check
      _
    $region7: #{tpu_custom_call.1} parent=1 // pred_check_branch
      %21 = sbr.rel (0) target = $region9
    $region8: #{tpu_custom_call.1} parent=1 // pred_region
      %s23 = ssub.s32 128, 128
      %24 = vsyncadd [#allocation6], %s23
      %s26 = sshll.u32 [#allocation5], 4
      %s27 = int_to_ptr.vmem [resolvable:$true] %s26
      %29 = dma.hbm_to_vmem [thread:$0]  %s1, 128, %s27, [#allocation6]
    $region9: #{tpu_custom_call.1} parent=1 // pred_fallthru
      _
    // Predicated region
    $region10: #{tpu_custom_call.1} parent=1 // pred_check
      _
    $region11: #{tpu_custom_call.1} parent=1 // pred_check_branch
      %31 = sbr.rel (0) target = $region13
    $region12: #{tpu_custom_call.1} parent=1 // pred_region
      %32 = dma.done [#allocation3], 128
    $region13: #{tpu_custom_call.1} parent=1 // pred_fallthru
      _
    // Predicated region
    $region14: #{tpu_custom_call.1} parent=1 // pred_check
      _
    $region15: #{tpu_custom_call.1} parent=1 // pred_check_branch
      %34 = sbr.rel (0) target = $region17
    $region16: #{tpu_custom_call.1} parent=1 // pred_region
      %35 = dma.done [#allocation6], 128
    $region17: #{tpu_custom_call.1} parent=1 // pred_fallthru
      _
    %p36 = scmp.eq.s32.totalorder 0, 0
    // Predicated region
    $region18: #{tpu_custom_call.1} parent=1 // pred_check
      %p37 = pneg %p36
    $region19: #{tpu_custom_call.1} parent=1 // pred_check_branch
      %39 = sbr.rel (%p37) target = $region21
    $region20: #{tpu_custom_call.1} parent=1 // pred_region
      %40 = vst [vmem:[#allocation7] sm:$0x1] 0.0
    $region21: #{tpu_custom_call.1} parent=1 // pred_fallthru
      _
    %v41 = vld [vmem:[#allocation2] sm:$0xff]
    %v42 = vld [vmem:[#allocation5] sm:$0xff]
    %v43 = vsub.f32 %v41, %v42
    %v44 = vand.u32 2147483647, %v43
    %vm45 = vcmp.lt.f32.partialorder %v44, 1.0
    %v46 = vmul.f32 %v43, 0.5
    %v47 = vmul.f32 %v46, %v43
    %v48 = vsub.f32 %v44, 0.5
    %v49 = vsel %vm45, %v47, %v48
    %v50 = vld [vmem:[#allocation7] sm:$0x1]
    %v51 = vrot.slane %v49, 4
    %v52 = vadd.f32 %v49, %v51
    %v53 = vrot.slane %v52, 2
    %v54 = vadd.f32 %v52, %v53
    %v55 = vrot.slane %v54, 1
    %v56 = vadd.f32 %v54, %v55
    %v57 = vadd.f32 %v50, %v56
    %58 = vst [vmem:[#allocation7] sm:$0x1] %v57
    // Predicated region
    $region22: #{tpu_custom_call.1} parent=1 // pred_check
      _
    $region23: #{tpu_custom_call.1} parent=1 // pred_check_branch
      %60 = sbr.rel (0) target = $region25
    $region24: #{tpu_custom_call.1} parent=1 // pred_region
      %s62 = ssub.s32 16, 16
      %63 = vsyncadd [#allocation4], %s62
      %s65 = sshll.u32 [#allocation7], 4
      %s66 = int_to_ptr.vmem [resolvable:$true] %s65
      %68 = dma.vmem_to_hbm [thread:$0]  %s66, 16, %s2, [#allocation4]
    $region25: #{tpu_custom_call.1} parent=1 // pred_fallthru
      _
    // Predicated region
    $region26: #{tpu_custom_call.1} parent=1 // pred_check
      _
    $region27: #{tpu_custom_call.1} parent=1 // pred_check_branch
      %70 = sbr.rel (0) target = $region29
    $region28: #{tpu_custom_call.1} parent=1 // pred_region
      %71 = dma.done [#allocation4], 16
    $region29: #{tpu_custom_call.1} parent=1 // pred_fallthru
      _
    %72 = vsyncpa [#allocation3], 1
    %73 = vsyncpa [#allocation6], 1
    %74 = vsyncpa [#allocation4], 1

</llo_original>
